<compile_context>
chip_gen: v7x
topology: tpu7x:2x2x1
jax: 0.10.0
libtpu: 0.0.40
codegen_flags: <defaults>
</compile_context>

<pallas_src>
import functools
import math

import jax
import jax.numpy as jnp
from jax.experimental import pallas as pl
from jax.experimental.pallas import tpu as pltpu

_HALF_LOG_2PI = 0.5 * math.log(2.0 * math.pi)
_STD_EPS = 1e-6


# ----------------------------------------------------------------------------
# Fused forward kernel: block-diag actor+critic MLP + Normal distribution math
# ----------------------------------------------------------------------------
def _fused_kernel(x_ref, noise_ref, w_ref, small_ref, out_ref, *,
                  layout, scale, use_given_action):
    n_layers = layout["n_layers"]
    A = layout["actor_out"]
    V = layout["critic_out"]
    B = x_ref.shape[0]

    # ---- fused actor|critic MLP: one bf16 MXU dot per layer ----
    h = x_ref[...]                                    # f32 (B, S)
    for i in range(n_layers):
        r0 = layout["row_offs"][i]
        din = layout["in_dims"][i]
        dout = layout["out_dims"][i]
        w = w_ref[r0:r0 + din, 0:dout]                # bf16 block-diag weight
        b = small_ref[i:i + 1, 0:dout]                # f32 bias row (1, dout)
        h = jnp.dot(h.astype(jnp.bfloat16), w,
                    preferred_element_type=jnp.float32) + b
        if i < n_layers - 1:
            h = jnp.maximum(h, 0.0)                   # ReLU (hidden layers only)

    mu = jnp.tanh(h[:, 0:A])                          # actor columns
    value = h[:, A:A + V]                             # critic columns

    # ---- Normal(mu, scale * softplus(std)), std math on the (1, A) row ----
    s = small_ref[n_layers:n_layers + 1, 0:A]         # raw std parameter, f32
    softplus = jnp.maximum(s, 0.0) + jnp.log1p(jnp.exp(-jnp.abs(s)))
    std = jnp.maximum(scale * softplus, _STD_EPS)
    log_std = jnp.log(std)

    if use_given_action:
        action = noise_ref[...]                       # externally supplied action
        z = (action - mu) / std
    else:
        eps = noise_ref[...]                          # standard-normal noise
        action = mu + std * eps                       # reparameterized sample
        z = eps                                       # == (action - mu)/std
    log_prob = -0.5 * z * z - log_std - _HALF_LOG_2PI
    entropy = jnp.mean(0.5 + _HALF_LOG_2PI + log_std)  # std has no batch dim

    # ---- single packed, lane-contiguous output slab (one writeback DMA) ----
    out_ref[:, 0:A] = mu
    out_ref[:, A:2 * A] = action
    out_ref[:, 2 * A:3 * A] = log_prob
    out_ref[:, 3 * A:3 * A + V] = value
    out_ref[:, 3 * A + V:3 * A + V + 1] = jnp.full((B, 1), entropy, jnp.float32)


# ----------------------------------------------------------------------------
# Parameter construction (mirrors nn.Linear fan-in init and module structure)
# ----------------------------------------------------------------------------
def _init_linear(key, in_dim, out_dim):
    kw, kb = jax.random.split(key)
    bound = 1.0 / math.sqrt(in_dim)
    w = jax.random.uniform(kw, (in_dim, out_dim), jnp.float32, -bound, bound)
    b = jax.random.uniform(kb, (1, out_dim), jnp.float32, -bound, bound)
    return w, b


def make_params(key, state_size, action_size, fc_layer_sizes):
    n_layers = len(fc_layer_sizes) + 1
    keys = jax.random.split(key, 2 * n_layers)
    # Mirrors the reference: critic final width is 1 when hidden layers exist,
    # action_size when fc_layer_sizes is empty (quirk of the original module).
    critic_out = 1 if len(fc_layer_sizes) > 0 else action_size
    dims_a = [state_size] + list(fc_layer_sizes) + [action_size]
    dims_c = [state_size] + list(fc_layer_sizes) + [critic_out]
    actor = [_init_linear(keys[i], dims_a[i], dims_a[i + 1]) for i in range(n_layers)]
    critic = [_init_linear(keys[n_layers + i], dims_c[i], dims_c[i + 1])
              for i in range(n_layers)]
    std = jnp.ones((1, action_size), jnp.float32) * 0.5
    return {"actor": actor, "critic": critic, "std": std}


def pack_params(params):
    """Pack actor+critic block-diagonally into one bf16 weight buffer and one
    f32 (biases | std) buffer.  Done ONCE at init time, not per call."""
    actor, critic, std = params["actor"], params["critic"], params["std"]
    n_layers = len(actor)

    packed_ws, in_dims, out_dims = [], [], []
    for i in range(n_layers):
        wa, _ = actor[i]
        wc, _ = critic[i]
        if i == 0:  # shared input -> column concat
            w = jnp.concatenate([wa, wc], axis=1)
        else:       # block-diagonal [[Wa, 0], [0, Wc]]
            za = jnp.zeros((wa.shape[0], wc.shape[1]), jnp.float32)
            zc = jnp.zeros((wc.shape[0], wa.shape[1]), jnp.float32)
            w = jnp.concatenate(
                [jnp.concatenate([wa, za], axis=1),
                 jnp.concatenate([zc, wc], axis=1)], axis=0)
        packed_ws.append(w)
        in_dims.append(w.shape[0])
        out_dims.append(w.shape[1])
    max_out = max(out_dims + [std.shape[1]])

    # Vertical stack of weights, each segment row-padded to a multiple of 8
    # (clean sublane alignment for the in-kernel static slices).
    segs, row_offs, rows = [], [], 0
    for w in packed_ws:
        r = w.shape[0]
        r_pad = ((r + 7) // 8) * 8
        seg = jnp.zeros((r_pad, max_out), jnp.float32).at[:r, :w.shape[1]].set(w)
        segs.append(seg)
        row_offs.append(rows)
        rows += r_pad
    w_buf = jnp.concatenate(segs, axis=0).astype(jnp.bfloat16)

    # Small f32 buffer: rows 0..n_layers-1 = packed biases, row n_layers = std.
    small = jnp.zeros((n_layers + 1, max_out), jnp.float32)
    for i in range(n_layers):
        b = jnp.concatenate([actor[i][1], critic[i][1]], axis=1)
        small = small.at[i, :b.shape[1]].set(b[0])
    small = small.at[n_layers, :std.shape[1]].set(std[0])

    layout = {
        "n_layers": n_layers,
        "row_offs": tuple(row_offs),
        "in_dims": tuple(in_dims),
        "out_dims": tuple(out_dims),
        "actor_out": actor[-1][0].shape[1],
        "critic_out": critic[-1][0].shape[1],
    }
    return w_buf, small, layout


# ----------------------------------------------------------------------------
# Forward pass (jitted; single fused grid-less Pallas kernel per call)
# ----------------------------------------------------------------------------
def make_forward(layout, scale=1.0):
    A = layout["actor_out"]
    V = layout["critic_out"]
    P = 3 * A + V + 1  # mu | action | log_prob | value | entropy-lane

    def _call(w_buf, small_buf, x, noise, use_given_action):
        B = x.shape[0]
        kern = functools.partial(
            _fused_kernel, layout=layout, scale=float(scale),
            use_given_action=use_given_action)
        vmem = pl.BlockSpec(memory_space=pltpu.MemorySpace.VMEM)
        packed = pl.pallas_call(
            kern,
            out_shape=jax.ShapeDtypeStruct((B, P), jnp.float32),
            in_specs=[vmem, vmem, vmem, vmem],
            out_specs=vmem,
        )(x, noise, w_buf, small_buf)
        mu = packed[:, 0:A]
        action = packed[:, A:2 * A]
        log_prob = packed[:, 2 * A:3 * A]
        value = jnp.squeeze(packed[:, 3 * A:3 * A + V])  # matches torch .squeeze()
        entropy = packed[0, 3 * A + V]
        return mu, action, log_prob, entropy, value

    @jax.jit
    def forward(w_buf, small_buf, x, eps, action=None):
        use_given = action is not None
        noise = action if use_given else eps
        return _call(w_buf, small_buf, x, noise, use_given)

    return forward


# ----------------------------------------------------------------------------
if __name__ == "__main__":
    state_size = 16
    action_size = 4
    fc_layer_sizes = [32, 32]
    batch = 8
    scale = 1.0

    key = jax.random.PRNGKey(0)
    k_params, k_x, k_eps = jax.random.split(key, 3)

    params = make_params(k_params, state_size, action_size, fc_layer_sizes)
    w_buf, small_buf, layout = pack_params(params)
    forward = make_forward(layout, scale=scale)

    x = jax.random.normal(k_x, (batch, state_size), jnp.float32)
    eps = jax.random.normal(k_eps, (batch, action_size), jnp.float32)

    # --- sampled-action path ---
    x_act, action, log_prob, entropy, x_cri = forward(w_buf, small_buf, x, eps)
    jax.block_until_ready((x_act, action, log_prob, entropy, x_cri))

    assert x_act.shape == (batch, action_size)
    assert action.shape == (batch, action_size)
    assert log_prob.shape == (batch, action_size)
    assert entropy.shape == ()
    assert x_cri.shape == (batch,)
    for t in (x_act, action, log_prob, x_cri):
        assert bool(jnp.all(jnp.isfinite(t)))
    assert bool(jnp.isfinite(entropy))

    # --- pure-JAX reference (bf16-matched matmuls) ---
    def ref_heads(xin):
        def head(layers):
            h = xin
            for i, (w, b) in enumerate(layers):
                h = jnp.dot(h.astype(jnp.bfloat16), w.astype(jnp.bfloat16),
                            preferred_element_type=jnp.float32) + b
                if i < len(layers) - 1:
                    h = jnp.maximum(h, 0.0)
            return h
        return jnp.tanh(head(params["actor"])), head(params["critic"])

    mu_ref, val_ref = ref_heads(x)
    assert bool(jnp.allclose(x_act, mu_ref, atol=1e-2, rtol=1e-2))
    assert bool(jnp.allclose(x_cri, jnp.squeeze(val_ref), atol=1e-2, rtol=1e-2))

    std_row = small_buf[layout["n_layers"], :action_size]
    std_ref = jnp.maximum(scale * jax.nn.softplus(std_row), _STD_EPS)
    lp_ref = -0.5 * eps * eps - jnp.log(std_ref) - _HALF_LOG_2PI
    assert bool(jnp.allclose(log_prob, lp_ref, atol=1e-4, rtol=1e-4))
    ent_ref = jnp.mean(0.5 + _HALF_LOG_2PI + jnp.log(std_ref))
    assert abs(float(entropy) - float(ent_ref)) < 1e-4

    # --- externally-supplied-action path (single kernel call) ---
    x_act2, action2, log_prob2, entropy2, x_cri2 = forward(
        w_buf, small_buf, x, eps, action=action)
    jax.block_until_ready((x_act2, action2, log_prob2, entropy2, x_cri2))
    assert bool(jnp.allclose(action2, action, atol=1e-6, rtol=0.0))
    assert bool(jnp.allclose(x_act2, x_act, atol=1e-6, rtol=0.0))
    assert bool(jnp.allclose(log_prob2, log_prob, atol=1e-4, rtol=1e-4))

    print("KERNEL_OK")
</pallas_src>

<mosaic_0001>
module attributes {stable_mosaic.version = 11 : i64} {
  func.func @_fused_kernel(%arg0: memref<8x16xf32, #tpu.memory_space<vmem>>, %arg1: memref<8x4xf32, #tpu.memory_space<vmem>>, %arg2: memref<144x64xbf16, #tpu.memory_space<vmem>>, %arg3: memref<4x64xf32, #tpu.memory_space<vmem>>, %arg4: memref<8x14xf32, #tpu.memory_space<vmem>>) attributes {dimension_semantics = [], scalar_prefetch = 0 : i64, scratch_operands = 0 : i64, tpu.core_type = #tpu.core_type<tc>} {
    %c0 = arith.constant 0 : index
    %c0_0 = arith.constant 0 : index
    %0 = vector.load %arg0[%c0, %c0_0] : memref<8x16xf32, #tpu.memory_space<vmem>>, vector<8x16xf32>
    %c0_1 = arith.constant 0 : index
    %c0_2 = arith.constant 0 : index
    %1 = vector.load %arg2[%c0_1, %c0_2] : memref<144x64xbf16, #tpu.memory_space<vmem>>, vector<16x64xbf16>
    %c0_3 = arith.constant 0 : index
    %c0_4 = arith.constant 0 : index
    %2 = vector.load %arg3[%c0_3, %c0_4] : memref<4x64xf32, #tpu.memory_space<vmem>>, vector<1x64xf32>
    %3 = arith.truncf %0 : vector<8x16xf32> to vector<8x16xbf16>
    %cst = arith.constant dense<0.000000e+00> : vector<8x64xf32>
    %4 = tpu.matmul %3, %1, %cst {dimension_numbers = #tpu.dot_dimension_numbers<[1], [0], [0], [1], [0, 0, 1, 1], [], []>} : vector<8x16xbf16>, vector<16x64xbf16>, vector<8x64xf32> -> vector<8x64xf32>
    %5 = vector.broadcast %2 : vector<1x64xf32> to vector<8x64xf32>
    %6 = arith.addf %4, %5 : vector<8x64xf32>
    %cst_5 = arith.constant 0.000000e+00 : f32
    %7 = vector.broadcast %cst_5 : f32 to vector<8x64xf32>
    %8 = arith.maximumf %6, %7 : vector<8x64xf32>
    %c16 = arith.constant 16 : index
    %c0_6 = arith.constant 0 : index
    %9 = vector.load %arg2[%c16, %c0_6] : memref<144x64xbf16, #tpu.memory_space<vmem>>, vector<64x64xbf16>
    %c1 = arith.constant 1 : index
    %c0_7 = arith.constant 0 : index
    %10 = vector.load %arg3[%c1, %c0_7] : memref<4x64xf32, #tpu.memory_space<vmem>>, vector<1x64xf32>
    %11 = arith.truncf %8 : vector<8x64xf32> to vector<8x64xbf16>
    %cst_8 = arith.constant dense<0.000000e+00> : vector<8x64xf32>
    %12 = tpu.matmul %11, %9, %cst_8 {dimension_numbers = #tpu.dot_dimension_numbers<[1], [0], [0], [1], [0, 0, 1, 1], [], []>} : vector<8x64xbf16>, vector<64x64xbf16>, vector<8x64xf32> -> vector<8x64xf32>
    %13 = vector.broadcast %10 : vector<1x64xf32> to vector<8x64xf32>
    %14 = arith.addf %12, %13 : vector<8x64xf32>
    %cst_9 = arith.constant 0.000000e+00 : f32
    %15 = vector.broadcast %cst_9 : f32 to vector<8x64xf32>
    %16 = arith.maximumf %14, %15 : vector<8x64xf32>
    %c80 = arith.constant 80 : index
    %c0_10 = arith.constant 0 : index
    %17 = vector.load %arg2[%c80, %c0_10] : memref<144x64xbf16, #tpu.memory_space<vmem>>, vector<64x5xbf16>
    %c2 = arith.constant 2 : index
    %c0_11 = arith.constant 0 : index
    %18 = vector.load %arg3[%c2, %c0_11] : memref<4x64xf32, #tpu.memory_space<vmem>>, vector<1x5xf32>
    %19 = arith.truncf %16 : vector<8x64xf32> to vector<8x64xbf16>
    %cst_12 = arith.constant dense<0.000000e+00> : vector<8x5xf32>
    %20 = tpu.matmul %19, %17, %cst_12 {dimension_numbers = #tpu.dot_dimension_numbers<[1], [0], [0], [1], [0, 0, 1, 1], [], []>} : vector<8x64xbf16>, vector<64x5xbf16>, vector<8x5xf32> -> vector<8x5xf32>
    %21 = vector.broadcast %18 : vector<1x5xf32> to vector<8x5xf32>
    %22 = arith.addf %20, %21 : vector<8x5xf32>
    %23 = vector.extract_strided_slice %22 {offsets = [0, 0], sizes = [8, 4], strides = [1, 1]} : vector<8x5xf32> to vector<8x4xf32>
    %24 = math.tanh %23 : vector<8x4xf32>
    %25 = vector.extract_strided_slice %22 {offsets = [0, 4], sizes = [8, 1], strides = [1, 1]} : vector<8x5xf32> to vector<8x1xf32>
    %c3 = arith.constant 3 : index
    %c0_13 = arith.constant 0 : index
    %26 = vector.load %arg3[%c3, %c0_13] : memref<4x64xf32, #tpu.memory_space<vmem>>, vector<1x4xf32>
    %cst_14 = arith.constant 0.000000e+00 : f32
    %27 = vector.broadcast %cst_14 : f32 to vector<1x4xf32>
    %28 = arith.maximumf %26, %27 : vector<1x4xf32>
    %29 = math.absf %26 : vector<1x4xf32>
    %cst_15 = arith.constant 0.000000e+00 : f32
    %30 = vector.broadcast %cst_15 : f32 to vector<1x4xf32>
    %31 = arith.subf %30, %29 : vector<1x4xf32>
    %32 = math.exp %31 : vector<1x4xf32>
    %33 = math.log1p %32 : vector<1x4xf32>
    %34 = arith.addf %28, %33 : vector<1x4xf32>
    %cst_16 = arith.constant 1.000000e+00 : f32
    %35 = vector.broadcast %cst_16 : f32 to vector<1x4xf32>
    %36 = arith.mulf %35, %34 : vector<1x4xf32>
    %cst_17 = arith.constant 9.99999997E-7 : f32
    %37 = vector.broadcast %cst_17 : f32 to vector<1x4xf32>
    %38 = arith.maximumf %36, %37 : vector<1x4xf32>
    %39 = math.log %38 : vector<1x4xf32>
    %c0_18 = arith.constant 0 : index
    %c0_19 = arith.constant 0 : index
    %40 = vector.load %arg1[%c0_18, %c0_19] : memref<8x4xf32, #tpu.memory_space<vmem>>, vector<8x4xf32>
    %41 = vector.broadcast %38 : vector<1x4xf32> to vector<8x4xf32>
    %42 = arith.mulf %41, %40 : vector<8x4xf32>
    %43 = arith.addf %24, %42 : vector<8x4xf32>
    %cst_20 = arith.constant -5.000000e-01 : f32
    %44 = vector.broadcast %cst_20 : f32 to vector<8x4xf32>
    %45 = arith.mulf %44, %40 : vector<8x4xf32>
    %46 = arith.mulf %45, %40 : vector<8x4xf32>
    %47 = vector.broadcast %39 : vector<1x4xf32> to vector<8x4xf32>
    %48 = arith.subf %46, %47 : vector<8x4xf32>
    %cst_21 = arith.constant 0.918938517 : f32
    %49 = vector.broadcast %cst_21 : f32 to vector<8x4xf32>
    %50 = arith.subf %48, %49 : vector<8x4xf32>
    %cst_22 = arith.constant 1.41893852 : f32
    %51 = vector.broadcast %cst_22 : f32 to vector<1x4xf32>
    %52 = arith.addf %51, %39 : vector<1x4xf32>
    %53 = vector.shape_cast %52 : vector<1x4xf32> to vector<1x1x4xf32>
    %cst_23 = arith.constant dense<0.000000e+00> : vector<1xf32>
    %54 = vector.multi_reduction <add>, %53, %cst_23 [1, 2] : vector<1x1x4xf32> to vector<1xf32>
    %55 = vector.shape_cast %54 : vector<1xf32> to vector<1x1x1xf32>
    %56 = vector.extract %55[0, 0, 0] : f32 from vector<1x1x1xf32>
    %cst_24 = arith.constant 4.000000e+00 : f32
    %57 = arith.divf %56, %cst_24 : f32
    %c0_25 = arith.constant 0 : index
    %c0_26 = arith.constant 0 : index
    %58 = vector.load %arg4[%c0_25, %c0_26] : memref<8x14xf32, #tpu.memory_space<vmem>>, vector<8x4xf32>
    tpu.vector_store %arg4[%c0_25, %c0_26], %24 {strides = array<i32>} : memref<8x14xf32, #tpu.memory_space<vmem>>, vector<8x4xf32>,
    %c0_27 = arith.constant 0 : index
    %c4 = arith.constant 4 : index
    %59 = vector.load %arg4[%c0_27, %c4] : memref<8x14xf32, #tpu.memory_space<vmem>>, vector<8x4xf32>
    tpu.vector_store %arg4[%c0_27, %c4], %43 {strides = array<i32>} : memref<8x14xf32, #tpu.memory_space<vmem>>, vector<8x4xf32>,
    %c0_28 = arith.constant 0 : index
    %c8 = arith.constant 8 : index
    %60 = vector.load %arg4[%c0_28, %c8] : memref<8x14xf32, #tpu.memory_space<vmem>>, vector<8x4xf32>
    tpu.vector_store %arg4[%c0_28, %c8], %50 {strides = array<i32>} : memref<8x14xf32, #tpu.memory_space<vmem>>, vector<8x4xf32>,
    %c0_29 = arith.constant 0 : index
    %c12 = arith.constant 12 : index
    %61 = vector.load %arg4[%c0_29, %c12] : memref<8x14xf32, #tpu.memory_space<vmem>>, vector<8x1xf32>
    tpu.vector_store %arg4[%c0_29, %c12], %25 {strides = array<i32>} : memref<8x14xf32, #tpu.memory_space<vmem>>, vector<8x1xf32>,
    %62 = vector.broadcast %57 : f32 to vector<8x1xf32>
    %c0_30 = arith.constant 0 : index
    %c13 = arith.constant 13 : index
    %63 = vector.load %arg4[%c0_30, %c13] : memref<8x14xf32, #tpu.memory_space<vmem>>, vector<8x1xf32>
    tpu.vector_store %arg4[%c0_30, %c13], %62 {strides = array<i32>} : memref<8x14xf32, #tpu.memory_space<vmem>>, vector<8x1xf32>,
    return
  }
}

</mosaic_0001>

<llo_original>
// kernel: forward.1
$region0: #{forward.1}
  #allocation0 [shape = 'u32[]', space=smem, size = 0x4, offset = 0x4, fixed_abs, tag = 'smem constant byte address 0x4 - core index']
  #allocation1 [shape = 'u32[144,128]{1,0:T(1,128)}', space=vmem, size = 0x12000, scoped, tag = 'internal scratch']
  %s0 = inlined_call_operand.vmem [shape: f32[8,16], index: 0, kind: input, shape index: {}]
  %s1 = inlined_call_operand.vmem [shape: f32[8,4], index: 1, kind: input, shape index: {}]
  %s2 = inlined_call_operand.vmem [shape: bf16[144,64], index: 2, kind: input, shape index: {}]
  %s3 = inlined_call_operand.vmem [shape: f32[4,64], index: 3, kind: input, shape index: {}]
  %s4 = inlined_call_operand.vmem [shape: f32[8,14], index: 4, kind: output, shape index: {}]
  %s5 = sld [smem:[#allocation0]]
  $region26: #{forward.1} parent=0
    _
  %s7 = ssub.s32 1, %s5
  %s8 = scalar_select 0, %s7, %s5
  // Predicated region
  $region2: #{forward.1} parent=0 // pred_check
    _
  $region3: #{forward.1} parent=0 // pred_check_branch
    %10 = sbr.rel (0) target = $region5
  $region4: #{forward.1} parent=0 // pred_region
    _
  $region5: #{forward.1} parent=0 // pred_fallthru
    _
  // Predicated region
  $region6: #{forward.1} parent=0 // pred_check
    _
  $region7: #{forward.1} parent=0 // pred_check_branch
    %12 = sbr.rel (0) target = $region9
  $region8: #{forward.1} parent=0 // pred_region
    _
  $region9: #{forward.1} parent=0 // pred_fallthru
    _
  // Predicated region
  $region10: #{forward.1} parent=0 // pred_check
    _
  $region11: #{forward.1} parent=0 // pred_check_branch
    %14 = sbr.rel (0) target = $region13
  $region12: #{forward.1} parent=0 // pred_region
    _
  $region13: #{forward.1} parent=0 // pred_fallthru
    _
  // Predicated region
  $region14: #{forward.1} parent=0 // pred_check
    _
  $region15: #{forward.1} parent=0 // pred_check_branch
    %16 = sbr.rel (0) target = $region17
  $region16: #{forward.1} parent=0 // pred_region
    _
  $region17: #{forward.1} parent=0 // pred_fallthru
    _
  %v18 = vld [vmem:[%s0] sm:$0xff]
  %v19 = vld [vmem:[%s2] sm:$0xf]
  %v20 = vld [vmem:[%s2 + $0x4] sm:$0xf]
  %v21 = vld [vmem:[%s3] sm:$0x1]
  %v22 = vpack.c.bf16 %v18, %v18
  %v23 = vlaneseq
  %v24 = vshrl.u32 %v23, 7
  %v25 = vsub.s32 0, %v24
  %v26 = vrot.slane %v21, %v25
  %v29 = vunpack.c.l.b16 %v19
  %v30 = vunpack.c.l.b16 %v20
  %v31 = vpack.c.b16 %v30, %v29
  %vm33 = vcmask 130048
  %v35 = vsel %vm33, %v22, 0
  %37 = vmatprep.subr.bf16.mxu0 0
  %38 = vmatpush1.bf16.msra.mxu0 %v31
  %39 = vmatprep.subr.bf16.mxu0 0
  %40 = vmatpush1.bf16.msra.mxu0 0
  %41 = vmatprep.subr.bf16.mxu0 0
  %42 = vmatpush1.bf16.msra.mxu0 0
  %43 = vmatprep.subr.bf16.mxu0 0
  %44 = vmatpush1.bf16.msra.mxu0 0
  %45 = vmatprep.subr.bf16.mxu0 0
  %46 = vmatpush1.bf16.msra.mxu0 0
  %47 = vmatprep.subr.bf16.mxu0 0
  %48 = vmatpush1.bf16.msra.mxu0 0
  %49 = vmatprep.subr.bf16.mxu0 0
  %50 = vmatpush1.bf16.msra.mxu0 0
  %51 = vmatprep.subr.bf16.mxu0 0
  %52 = vmatpush1.bf16.msra.mxu0 0
  %53 = vmatprep.subr.bf16.mxu0 0
  %54 = vmatpush1.bf16.msra.mxu0 0
  %55 = vmatprep.subr.bf16.mxu0 0
  %56 = vmatpush1.bf16.msra.mxu0 0
  %57 = vmatprep.subr.bf16.mxu0 0
  %58 = vmatpush1.bf16.msra.mxu0 0
  %59 = vmatprep.subr.bf16.mxu0 0
  %60 = vmatpush1.bf16.msra.mxu0 0
  %61 = vmatprep.subr.bf16.mxu0 0
  %62 = vmatpush1.bf16.msra.mxu0 0
  %63 = vmatprep.subr.bf16.mxu0 0
  %64 = vmatpush1.bf16.msra.mxu0 0
  %65 = vmatprep.subr.bf16.mxu0 0
  %66 = vmatpush1.bf16.msra.mxu0 0
  %67 = vmatprep.subr.bf16.mxu0 0
  %68 = vmatpush1.bf16.msra.mxu0 0
  %69 = vmatprep.mubr.bf16.mxu0 0
  %70 = vmatmul.mubr.bf16.gmra.mrb[0].mxu0 %v35
  %v71 = vpop.f32.mrb[0].mxu0
  %v72 = vadd.f32 %v26, %v71
  %v73 = vpop.f32.mrb[0].mxu0
  %v74 = vpop.f32.mrb[0].mxu0
  %v75 = vpop.f32.mrb[0].mxu0
  %76 = vdwg.mxu0
  %v77 = vmax.f32 %v72, 0.0
  %v78 = vld [vmem:[%s2 + $0x8] sm:$0xf]
  %v79 = vld [vmem:[%s2 + $0xc] sm:$0xf]
  %v80 = vld [vmem:[%s2 + $0x10] sm:$0xf]
  %v81 = vld [vmem:[%s2 + $0x14] sm:$0xf]
  %v82 = vld [vmem:[%s2 + $0x18] sm:$0xf]
  %v83 = vld [vmem:[%s2 + $0x1c] sm:$0xf]
  %v84 = vld [vmem:[%s2 + $0x20] sm:$0xf]
  %v85 = vld [vmem:[%s2 + $0x24] sm:$0xf]
  %v86 = vld [vmem:[%s3 + $0x1] sm:$0x1]
  %v87 = vpack.c.bf16 %v77, %v77
  %v88 = vlaneseq
  %v89 = vshrl.u32 %v88, 7
  %v90 = vsub.s32 0, %v89
  %v91 = vrot.slane %v86, %v90
  %v100 = vunpack.c.l.b16 %v78
  %v101 = vunpack.c.l.b16 %v79
  %v102 = vunpack.c.l.b16 %v80
  %v103 = vunpack.c.l.b16 %v81
  %v104 = vunpack.c.l.b16 %v82
  %v105 = vunpack.c.l.b16 %v83
  %v106 = vunpack.c.l.b16 %v84
  %v107 = vunpack.c.l.b16 %v85
  %v108 = vpack.c.b16 %v101, %v100
  %v109 = vpack.c.b16 %v103, %v102
  %v110 = vpack.c.b16 %v105, %v104
  %v111 = vpack.c.b16 %v107, %v106
  %vm116 = vcmask 523264
  %v118 = vsel %vm116, %v87, 0
  %120 = vmatprep.subr.bf16.mxu0 0
  %121 = vmatpush1.bf16.msra.mxu0 %v108
  %122 = vmatprep.subr.bf16.mxu0 0
  %123 = vmatpush1.bf16.msra.mxu0 %v109
  %124 = vmatprep.subr.bf16.mxu0 0
  %125 = vmatpush1.bf16.msra.mxu0 %v110
  %126 = vmatprep.subr.bf16.mxu0 0
  %127 = vmatpush1.bf16.msra.mxu0 %v111
  %128 = vmatprep.subr.bf16.mxu0 0
  %129 = vmatpush1.bf16.msra.mxu0 0
  %130 = vmatprep.subr.bf16.mxu0 0
  %131 = vmatpush1.bf16.msra.mxu0 0
  %132 = vmatprep.subr.bf16.mxu0 0
  %133 = vmatpush1.bf16.msra.mxu0 0
  %134 = vmatprep.subr.bf16.mxu0 0
  %135 = vmatpush1.bf16.msra.mxu0 0
  %136 = vmatprep.subr.bf16.mxu0 0
  %137 = vmatpush1.bf16.msra.mxu0 0
  %138 = vmatprep.subr.bf16.mxu0 0
  %139 = vmatpush1.bf16.msra.mxu0 0
  %140 = vmatprep.subr.bf16.mxu0 0
  %141 = vmatpush1.bf16.msra.mxu0 0
  %142 = vmatprep.subr.bf16.mxu0 0
  %143 = vmatpush1.bf16.msra.mxu0 0
  %144 = vmatprep.subr.bf16.mxu0 0
  %145 = vmatpush1.bf16.msra.mxu0 0
  %146 = vmatprep.subr.bf16.mxu0 0
  %147 = vmatpush1.bf16.msra.mxu0 0
  %148 = vmatprep.subr.bf16.mxu0 0
  %149 = vmatpush1.bf16.msra.mxu0 0
  %150 = vmatprep.subr.bf16.mxu0 0
  %151 = vmatpush1.bf16.msra.mxu0 0
  %152 = vmatprep.mubr.bf16.mxu0 0
  %153 = vmatmul.mubr.bf16.gmra.mrb[0].mxu0 %v118
  %v154 = vpop.f32.mrb[0].mxu0
  %v155 = vadd.f32 %v91, %v154
  %v156 = vpop.f32.mrb[0].mxu0
  %v157 = vpop.f32.mrb[0].mxu0
  %v158 = vpop.f32.mrb[0].mxu0
  %159 = vdwg.mxu0
  %v160 = vmax.f32 %v155, 0.0
  %v161 = vld [vmem:[%s2 + $0x28] sm:$0xf]
  %v162 = vld [vmem:[%s2 + $0x2c] sm:$0xf]
  %v163 = vld [vmem:[%s2 + $0x30] sm:$0xf]
  %v164 = vld [vmem:[%s2 + $0x34] sm:$0xf]
  %v165 = vld [vmem:[%s2 + $0x38] sm:$0xf]
  %v166 = vld [vmem:[%s2 + $0x3c] sm:$0xf]
  %v167 = vld [vmem:[%s2 + $0x40] sm:$0xf]
  %v168 = vld [vmem:[%s2 + $0x44] sm:$0xf]
  %v169 = vld [vmem:[%s3 + $0x2] sm:$0x1]
  %v170 = vpack.c.bf16 %v160, %v160
  %v171 = vlaneseq
  %v172 = vshrl.u32 %v171, 7
  %v173 = vsub.s32 0, %v172
  %v174 = vrot.slane %v169, %v173
  %v183 = vunpack.c.l.b16 %v161
  %v184 = vunpack.c.l.b16 %v162
  %v185 = vunpack.c.l.b16 %v163
  %v186 = vunpack.c.l.b16 %v164
  %v187 = vunpack.c.l.b16 %v165
  %v188 = vunpack.c.l.b16 %v166
  %v189 = vunpack.c.l.b16 %v167
  %v190 = vunpack.c.l.b16 %v168
  %v191 = vpack.c.b16 %v184, %v183
  %v192 = vpack.c.b16 %v186, %v185
  %v193 = vpack.c.b16 %v188, %v187
  %v194 = vpack.c.b16 %v190, %v189
  %v200 = vsel %vm116, %v170, 0
  %202 = vmatprep.subr.bf16.mxu0 0
  %203 = vmatpush1.bf16.msra.mxu0 %v191
  %204 = vmatprep.subr.bf16.mxu0 0
  %205 = vmatpush1.bf16.msra.mxu0 %v192
  %206 = vmatprep.subr.bf16.mxu0 0
  %207 = vmatpush1.bf16.msra.mxu0 %v193
  %208 = vmatprep.subr.bf16.mxu0 0
  %209 = vmatpush1.bf16.msra.mxu0 %v194
  %210 = vmatprep.subr.bf16.mxu0 0
  %211 = vmatpush1.bf16.msra.mxu0 0
  %212 = vmatprep.subr.bf16.mxu0 0
  %213 = vmatpush1.bf16.msra.mxu0 0
  %214 = vmatprep.subr.bf16.mxu0 0
  %215 = vmatpush1.bf16.msra.mxu0 0
  %216 = vmatprep.subr.bf16.mxu0 0
  %217 = vmatpush1.bf16.msra.mxu0 0
  %218 = vmatprep.subr.bf16.mxu0 0
  %219 = vmatpush1.bf16.msra.mxu0 0
  %220 = vmatprep.subr.bf16.mxu0 0
  %221 = vmatpush1.bf16.msra.mxu0 0
  %222 = vmatprep.subr.bf16.mxu0 0
  %223 = vmatpush1.bf16.msra.mxu0 0
  %224 = vmatprep.subr.bf16.mxu0 0
  %225 = vmatpush1.bf16.msra.mxu0 0
  %226 = vmatprep.subr.bf16.mxu0 0
  %227 = vmatpush1.bf16.msra.mxu0 0
  %228 = vmatprep.subr.bf16.mxu0 0
  %229 = vmatpush1.bf16.msra.mxu0 0
  %230 = vmatprep.subr.bf16.mxu0 0
  %231 = vmatpush1.bf16.msra.mxu0 0
  %232 = vmatprep.subr.bf16.mxu0 0
  %233 = vmatpush1.bf16.msra.mxu0 0
  %234 = vmatprep.mubr.bf16.mxu0 0
  %235 = vmatmul.mubr.bf16.gmra.mrb[0].mxu0 %v200
  %v236 = vpop.f32.mrb[0].mxu0
  %v237 = vadd.f32 %v174, %v236
  %v238 = vpop.f32.mrb[0].mxu0
  %v239 = vpop.f32.mrb[0].mxu0
  %v240 = vpop.f32.mrb[0].mxu0
  %241 = vdwg.mxu0
  %v242 = vtanh.pop %v237
  %v243 = vld [vmem:[%s3 + $0x3] sm:$0x1]
  %v244 = vmax.f32 %v243, 0.0
  %v245 = vand.u32 2147483647, %v243
  %v246 = vsub.f32 0.0, %v245
  %v247 = vmul.f32 %v246, 1.442695
  %v248 = vpow.pop %v247
  %v249 = vadd.f32 %v248, 1.0
  %v250 = vlog2.pop %v249
  %v251 = vmul.f32 %v250, 0.6931472
  %v252 = vmul.f32 -0.5, %v248
  %v253 = vadd.f32 %v252, 1.0
  %v254 = vmul.f32 %v253, %v248
  %v255 = vand.u32 2147483647, %v248
  %vm256 = vcmp.lt.f32.partialorder %v255, 0.0004427343
  %v257 = vsel %vm256, %v254, %v251
  %v258 = vadd.f32 %v244, %v257
  %v259 = vmax.f32 %v258, 1e-06
  %v260 = vlog2.pop %v259
  %v261 = vmul.f32 %v260, 0.6931472
  %v262 = vld [vmem:[%s1] sm:$0xff]
  %v263 = vlaneseq
  %v264 = vshrl.u32 %v263, 7
  %v265 = vsub.s32 0, %v264
  %v266 = vrot.slane %v259, %v265
  %v267 = vmul.f32 %v266, %v262
  %v268 = vadd.f32 %v242, %v267
  %v269 = vmul.f32 %v262, -0.5
  %v270 = vmul.f32 %v269, %v262
  %v271 = vlaneseq
  %v272 = vshrl.u32 %v271, 7
  %v273 = vsub.s32 0, %v272
  %v274 = vrot.slane %v261, %v273
  %v275 = vsub.f32 %v270, %v274
  %v276 = vsub.f32 %v275, 0.9189385
  %v277 = vadd.f32 %v261, 1.4189385
  %vm278 = vcmask 24576
  %v279 = vsel %vm278, %v277, 0.0
  %280 = vadd.xlane.f32.xlu0 %v279
  %v281 = vpop.xlane.xlu0 %280
  %v282 = vrot.slane %v281, 4
  %v283 = vadd.f32 %v281, %v282
  %v284 = vrot.slane %v283, 2
  %v285 = vadd.f32 %v283, %v284
  %v286 = vrot.slane %v285, 1
  %v287 = vadd.f32 %v285, %v286
  %s288 = vtos %v287
  %v289 = vrcp.pop 4.0
  %s290 = vtos %v289
  %s291 = smul.f32 %s288, %s290
  %vm292 = vcmask 31744
  %293 = vst.msk [vmem:[%s4] sm:$0xff] %vm292, %v242
  %295 = vrot.lane.b32.xlu0 %v268, 4
  %v296 = vpop.permute.xlu0 %295
  %vm298 = vcmask 64544
  %299 = vst.msk [vmem:[%s4] sm:$0xff] %vm298, %v296
  %301 = vrot.lane.b32.xlu0 %v276, 8
  %v302 = vpop.permute.xlu0 %301
  %vm304 = vcmask 97344
  %305 = vst.msk [vmem:[%s4] sm:$0xff] %vm304, %v302
  %307 = vrot.lane.b32.xlu0 %v237, 8
  %v308 = vpop.permute.xlu0 %307
  %vm310 = vcmask 105568
  %311 = vst.msk [vmem:[%s4] sm:$0xff] %vm310, %v308
  %v312 = vstv %s291
  %vm313 = vcmask 113768
  %314 = vst.msk [vmem:[%s4] sm:$0xff] %vm313, %v312
  // Predicated region
  $region18: #{forward.1} parent=0 // pred_check
    _
  $region19: #{forward.1} parent=0 // pred_check_branch
    %316 = sbr.rel (0) target = $region21
  $region20: #{forward.1} parent=0 // pred_region
    _
  $region21: #{forward.1} parent=0 // pred_fallthru
    _
  // Predicated region
  $region22: #{forward.1} parent=0 // pred_check
    _
  $region23: #{forward.1} parent=0 // pred_check_branch
    %318 = sbr.rel (0) target = $region25
  $region24: #{forward.1} parent=0 // pred_region
    _
  $region25: #{forward.1} parent=0 // pred_fallthru
    _

</llo_original>
